<compile_context>
chip_gen: v7x
topology: tpu7x:2x2x1
jax: 0.10.0
libtpu: 0.0.40
codegen_flags: <defaults>
</compile_context>

<pallas_src>
import jax
import jax.numpy as jnp
from jax import lax
from jax.experimental import pallas as pl
from jax.experimental.pallas import tpu as pltpu


def _round_up(x, m):
    return ((x + m - 1) // m) * m


def _vmem_plan():
    """Per-generation (vmem_limit_bytes, tile+temp budget) plan."""
    phys = 64 * 1024 * 1024  # conservative default (v7x-sized)
    try:
        info = pltpu.get_tpu_info()
        phys = int(getattr(info, "vmem_capacity_bytes", phys))
    except Exception:
        pass
    if phys >= 128 * 1024 * 1024:
        # v5e / v6e: 128 MiB physical VMEM per TensorCore.
        vmem_limit = 96 * 1024 * 1024
    else:
        # v7x: 64 MiB physical per TensorCore — leave room for compiler
        # scratch and the double buffers.
        vmem_limit = 48 * 1024 * 1024
    budget = vmem_limit // 2  # keep tiles + temps under ~50% of the limit
    return vmem_limit, budget


def _choose_block_b(B, N, L, D, budget_bytes, dtype_bytes=4):
    """Largest sublane-aligned batch block whose double-buffered I/O tiles
    AND in-kernel (L,N) intermediates fit the per-generation VMEM budget."""
    io_per_batch = 2 * dtype_bytes * (N * D + L * D + N + L)   # double-buffered
    tmp_per_batch = 3 * dtype_bytes * L * N                     # u, e, bcast temp
    per_batch = io_per_batch + tmp_per_batch
    bb = max(1, budget_bytes // max(per_batch, 1))

    if bb >= B:
        if B > 8:
            # Keep >=2 grid steps so the parallel batch axis can be split
            # across v7x's two TensorCores (round DOWN to stay unpadded-ish).
            half = ((B // 2) // 8) * 8
            if half >= 8:
                return half
        # Full-extent block: exempt from the (8,128) rule, no batch padding.
        return B

    if bb < 8:
        # Even a few batches blow the budget; fall back to the smallest legal
        # block (full-extent if B itself is small).
        # TODO(synk): switch to the N-tiled flash-style variant here.
        return B if B <= 8 else 8

    return min(B, (bb // 8) * 8)


def _make_aoa_kernel(inv_scale, n_cols, use_bf16_matmul):
    inv_n = 1.0 / float(n_cols)

    def aoa_kernel(raw_ref, label_ref, inp_att_ref, lab_att_ref):
        raw = raw_ref[...]      # (Bb, N, D)
        lab = label_ref[...]    # (Bb, L, D)

        if use_bf16_matmul:
            raw = raw.astype(jnp.bfloat16)
            lab = lab.astype(jnp.bfloat16)

        # u = label @ raw^T / sqrt(d_k)  -> (Bb, L, N)
        # Batched dot_general contracting D; no materialized transpose.
        u = lax.dot_general(
            lab, raw,
            dimension_numbers=(((2,), (2,)), ((0,), (0,))),
            preferred_element_type=jnp.float32) * inv_scale

        # Single exp pass shared by both softmaxes (per-batch global-max
        # shift; mathematically exact, only differs from per-axis-max softmax
        # if some row/col max is ~88 nats below the batch max -> f32
        # underflow, which typical activations never hit).
        g = jnp.max(jnp.max(u, axis=2, keepdims=True), axis=1, keepdims=True)
        e = jnp.exp(u - g)                                   # (Bb, L, N)

        row_sum = jnp.sum(e, axis=2, keepdims=True)          # (Bb, L, 1)
        col_sum = jnp.sum(e, axis=1, keepdims=True)          # (Bb, 1, N)

        # Reciprocals only on the small sum tensors (exact, not approx, to
        # stay within 1e-5 of the reference); the (Bb,L,N)-sized ops below
        # are plain VALU multiplies — no full-tile divide remains.
        inv_col = pl.reciprocal(col_sum)                     # (Bb, 1, N)
        inv_row = pl.reciprocal(row_sum)                     # (Bb, L, 1)

        # col softmax (over L) mean over N, without materializing col_attn:
        #   col_mean[b,l] = (1/N) * sum_n e[b,l,n] * inv_col[b,n]
        col_mean = jnp.sum(e * inv_col, axis=2, keepdims=True) * inv_n  # (Bb,L,1)

        # input_att[b,n] = sum_l row_attn[b,l,n] * col_mean[b,l]
        #                = sum_l e[b,l,n] * (col_mean[b,l] / row_sum[b,l])
        # VPU multiply + sublane reduce (expected to hide under the EUP exp
        # stream; move to the MXU only if the bundle shows VALU/XLU binding).
        w = col_mean * inv_row                               # (Bb, L, 1)
        inp_att = jnp.sum(e * w, axis=1)                     # (Bb, N)

        # TODO(synk): row_mean (mean of row_attn over dim=1) in the PyTorch
        # module is dead code (never used) and is intentionally omitted.

        inp_att_ref[...] = inp_att.astype(inp_att_ref.dtype)
        lab_att_ref[...] = col_mean[:, :, 0].astype(lab_att_ref.dtype)

    return aoa_kernel


def aoa_forward(raw_embedding, label_embedding, d_k, block_b=None,
                use_bf16_matmul=False):
    """Pallas implementation of AOA.forward.

    raw_embedding:   (B, N, d_k)
    label_embedding: (B, L, d_k)
    returns (input_att (B, N), label_att (B, L))
    """
    B, N, D = raw_embedding.shape
    Bl, L, Dl = label_embedding.shape
    assert B == Bl and D == Dl == d_k

    vmem_limit, budget = _vmem_plan()
    if block_b is None:
        block_b = _choose_block_b(B, N, L, D, budget)

    # Pad the batch only if needed so it divides into blocks. Zero-padded
    # batches yield u=0 -> e=1 everywhere, so all sums are finite (no NaN/Inf
    # can leak) and the garbage rows are sliced away below.
    B_pad = _round_up(B, block_b)
    if B_pad != B:
        pad = ((0, B_pad - B), (0, 0), (0, 0))
        raw_embedding = jnp.pad(raw_embedding, pad)
        label_embedding = jnp.pad(label_embedding, pad)

    grid_b = B_pad // block_b
    inv_scale = 1.0 / float(d_k) ** 0.5
    kernel = _make_aoa_kernel(inv_scale, N, use_bf16_matmul)
    out_dtype = raw_embedding.dtype

    inp_att, lab_att = pl.pallas_call(
        kernel,
        out_shape=(
            jax.ShapeDtypeStruct((B_pad, N), out_dtype),
            jax.ShapeDtypeStruct((B_pad, L), out_dtype),
        ),
        grid_spec=pltpu.PrefetchScalarGridSpec(
            num_scalar_prefetch=0,
            grid=(grid_b,),
            in_specs=[
                pl.BlockSpec((block_b, N, D), lambda b: (b, 0, 0)),
                pl.BlockSpec((block_b, L, D), lambda b: (b, 0, 0)),
            ],
            out_specs=[
                pl.BlockSpec((block_b, N), lambda b: (b, 0)),
                pl.BlockSpec((block_b, L), lambda b: (b, 0)),
            ],
        ),
        compiler_params=pltpu.CompilerParams(
            dimension_semantics=("parallel",),
            vmem_limit_bytes=vmem_limit,
        ),
    )(raw_embedding, label_embedding)

    return inp_att[:B], lab_att[:B]


def aoa_reference(raw_embedding, label_embedding, d_k):
    """Pure-JAX reference mirroring the PyTorch module exactly."""
    scale = float(d_k) ** 0.5
    u = jnp.einsum("bld,bnd->bln", label_embedding, raw_embedding) / scale
    row_attn = jax.nn.softmax(u, axis=2)
    col_attn = jax.nn.softmax(u, axis=1)
    col_mean = jnp.mean(col_attn, axis=2, keepdims=True)          # (B, L, 1)
    input_att = jnp.einsum("bln,blk->bnk",
                           row_attn, col_mean)[..., 0]            # (B, N)
    label_att = col_mean[..., 0]                                  # (B, L)
    return input_att, label_att


if __name__ == "__main__":
    # Small deterministic shapes: batch=2, N (input seq)=16, L (labels)=8, d_k=32.
    B, N, L, d_k = 2, 16, 8, 32
    key = jax.random.PRNGKey(0)
    k_raw, k_lab = jax.random.split(key)
    raw_embedding = jax.random.normal(k_raw, (B, N, d_k), dtype=jnp.float32)
    label_embedding = jax.random.normal(k_lab, (B, L, d_k), dtype=jnp.float32)

    input_att, label_att = aoa_forward(raw_embedding, label_embedding, d_k)
    jax.block_until_ready((input_att, label_att))

    ref_input_att, ref_label_att = aoa_reference(
        raw_embedding, label_embedding, d_k)

    assert input_att.shape == (B, N) and label_att.shape == (B, L)
    assert jnp.allclose(input_att, ref_input_att, atol=1e-5, rtol=1e-5)
    assert jnp.allclose(label_att, ref_label_att, atol=1e-5, rtol=1e-5)

    print("KERNEL_OK")
</pallas_src>

<mosaic_0001>
module attributes {stable_mosaic.version = 11 : i64} {
  func.func @aoa_kernel(%arg0: i32, %arg1: memref<2x16x32xf32, #tpu.memory_space<vmem>>, %arg2: memref<2x8x32xf32, #tpu.memory_space<vmem>>, %arg3: memref<2x16xf32, #tpu.memory_space<vmem>>, %arg4: memref<2x8xf32, #tpu.memory_space<vmem>>) attributes {dimension_semantics = [#tpu.dimension_semantics<parallel>], iteration_bounds = array<i64: 1>, scalar_prefetch = 0 : i64, scratch_operands = 0 : i64, tpu.core_type = #tpu.core_type<tc>, window_params = [{transform_indices = @transform_0, window_bounds = array<i64: 2, 16, 32>}, {transform_indices = @transform_1, window_bounds = array<i64: 2, 8, 32>}, {transform_indices = @transform_2, window_bounds = array<i64: 2, 16>}, {transform_indices = @transform_3, window_bounds = array<i64: 2, 8>}]} {
    %c0 = arith.constant 0 : index
    %c0_0 = arith.constant 0 : index
    %c0_1 = arith.constant 0 : index
    %0 = vector.load %arg1[%c0, %c0_0, %c0_1] : memref<2x16x32xf32, #tpu.memory_space<vmem>>, vector<2x16x32xf32>
    %c0_2 = arith.constant 0 : index
    %c0_3 = arith.constant 0 : index
    %c0_4 = arith.constant 0 : index
    %1 = vector.load %arg2[%c0_2, %c0_3, %c0_4] : memref<2x8x32xf32, #tpu.memory_space<vmem>>, vector<2x8x32xf32>
    %cst = arith.constant dense<0.000000e+00> : vector<2x8x16xf32>
    %2 = tpu.matmul %1, %0, %cst {dimension_numbers = #tpu.dot_dimension_numbers<[2], [2], [1], [1], [0, 0, 0, 1, 1, 1], [0], [0]>} : vector<2x8x32xf32>, vector<2x16x32xf32>, vector<2x8x16xf32> -> vector<2x8x16xf32>
    %cst_5 = arith.constant 0.176776692 : f32
    %3 = vector.broadcast %cst_5 : f32 to vector<2x8x16xf32>
    %4 = arith.mulf %2, %3 : vector<2x8x16xf32>
    %cst_6 = arith.constant dense<0xFF800000> : vector<2x8xf32>
    %5 = vector.multi_reduction <maximumf>, %4, %cst_6 [2] : vector<2x8x16xf32> to vector<2x8xf32>
    %6 = vector.shape_cast %5 : vector<2x8xf32> to vector<2x8x1xf32>
    %cst_7 = arith.constant dense<0xFF800000> : vector<2x1xf32>
    %7 = vector.multi_reduction <maximumf>, %6, %cst_7 [1] : vector<2x8x1xf32> to vector<2x1xf32>
    %8 = vector.shape_cast %7 : vector<2x1xf32> to vector<2x1x1xf32>
    %9 = vector.broadcast %8 : vector<2x1x1xf32> to vector<2x8x16xf32>
    %10 = arith.subf %4, %9 : vector<2x8x16xf32>
    %11 = math.exp %10 : vector<2x8x16xf32>
    %cst_8 = arith.constant dense<0.000000e+00> : vector<2x8xf32>
    %12 = vector.multi_reduction <add>, %11, %cst_8 [2] : vector<2x8x16xf32> to vector<2x8xf32>
    %13 = vector.shape_cast %12 : vector<2x8xf32> to vector<2x8x1xf32>
    %cst_9 = arith.constant dense<0.000000e+00> : vector<2x16xf32>
    %14 = vector.multi_reduction <add>, %11, %cst_9 [1] : vector<2x8x16xf32> to vector<2x16xf32>
    %15 = vector.shape_cast %14 : vector<2x16xf32> to vector<2x1x16xf32>
    %16 = tpu.reciprocal %15 : vector<2x1x16xf32> -> vector<2x1x16xf32>
    %17 = tpu.reciprocal %13 : vector<2x8x1xf32> -> vector<2x8x1xf32>
    %18 = vector.broadcast %16 : vector<2x1x16xf32> to vector<2x8x16xf32>
    %19 = arith.mulf %11, %18 : vector<2x8x16xf32>
    %cst_10 = arith.constant dense<0.000000e+00> : vector<2x8xf32>
    %20 = vector.multi_reduction <add>, %19, %cst_10 [2] : vector<2x8x16xf32> to vector<2x8xf32>
    %21 = vector.shape_cast %20 : vector<2x8xf32> to vector<2x8x1xf32>
    %cst_11 = arith.constant 6.250000e-02 : f32
    %22 = vector.broadcast %cst_11 : f32 to vector<2x8x1xf32>
    %23 = arith.mulf %21, %22 : vector<2x8x1xf32>
    %24 = arith.mulf %23, %17 : vector<2x8x1xf32>
    %25 = vector.broadcast %24 : vector<2x8x1xf32> to vector<2x8x16xf32>
    %26 = arith.mulf %11, %25 : vector<2x8x16xf32>
    %cst_12 = arith.constant dense<0.000000e+00> : vector<2x16xf32>
    %27 = vector.multi_reduction <add>, %26, %cst_12 [1] : vector<2x8x16xf32> to vector<2x16xf32>
    %c0_13 = arith.constant 0 : index
    %c0_14 = arith.constant 0 : index
    %28 = vector.load %arg3[%c0_13, %c0_14] : memref<2x16xf32, #tpu.memory_space<vmem>>, vector<2x16xf32>
    tpu.vector_store %arg3[%c0_13, %c0_14], %27 {strides = array<i32>} : memref<2x16xf32, #tpu.memory_space<vmem>>, vector<2x16xf32>,
    %29 = vector.shape_cast %23 : vector<2x8x1xf32> to vector<2x8xf32>
    %c0_15 = arith.constant 0 : index
    %c0_16 = arith.constant 0 : index
    %30 = vector.load %arg4[%c0_15, %c0_16] : memref<2x8xf32, #tpu.memory_space<vmem>>, vector<2x8xf32>
    tpu.vector_store %arg4[%c0_15, %c0_16], %29 {strides = array<i32>} : memref<2x8xf32, #tpu.memory_space<vmem>>, vector<2x8xf32>,
    return
  }
  func.func @transform_0(%arg0: i32) -> (i32, i32, i32) {
    %c0_i32 = arith.constant 0 : i32
    %c0_i32_0 = arith.constant 0 : i32
    %c0_i32_1 = arith.constant 0 : i32
    return %arg0, %c0_i32, %c0_i32_0 : i32, i32, i32
  }
  func.func @transform_1(%arg0: i32) -> (i32, i32, i32) {
    %c0_i32 = arith.constant 0 : i32
    %c0_i32_0 = arith.constant 0 : i32
    %c0_i32_1 = arith.constant 0 : i32
    return %arg0, %c0_i32, %c0_i32_0 : i32, i32, i32
  }
  func.func @transform_2(%arg0: i32) -> (i32, i32) {
    %c0_i32 = arith.constant 0 : i32
    %c0_i32_0 = arith.constant 0 : i32
    return %arg0, %c0_i32 : i32, i32
  }
  func.func @transform_3(%arg0: i32) -> (i32, i32) {
    %c0_i32 = arith.constant 0 : i32
    %c0_i32_0 = arith.constant 0 : i32
    return %arg0, %c0_i32 : i32, i32
  }
}

</mosaic_0001>

<llo_original>
// kernel: tpu_custom_call.1
$region0: #{tpu_custom_call.1}
  #allocation0 [shape = 'u32[]', space=smem, size = 0x4, offset = 0x4, fixed_abs, tag = 'smem constant byte address 0x4 - core index']
  #allocation1 [shape = 'u32[144,128]{1,0:T(1,128)}', space=vmem, size = 0x12000, scoped, tag = 'internal scratch']
  %s0 = inlined_call_operand.hbm [shape: f32[2,16,32], index: 0, kind: input, shape index: {}]
  %s1 = inlined_call_operand.hbm [shape: f32[2,8,32], index: 1, kind: input, shape index: {}]
  %s2 = inlined_call_operand.hbm [shape: f32[2,16], index: 2, kind: output, shape index: {0}]
  %s3 = inlined_call_operand.hbm [shape: f32[2,8], index: 3, kind: output, shape index: {1}]
  %4 = xla_tuple %s2, %s3
  %s5 = sld [smem:[#allocation0]]
  $region34: #{tpu_custom_call.1} parent=0
    _
  %s7 = ssub.s32 1, %s5
  %s8 = scalar_select 0, %s7, %s5
  $region1: #{tpu_custom_call.1} parent=0
    #allocation2 [shape = 'u8[16384]{0}', space=vmem, size = 0x4000, scoped, tag = 'input window, operand 0, single buffered']
    #allocation3 [shape = 's32[1]{0}', space=sflag, size = 0x4, scoped, tag = 'scoped memory for tpu_custom_call.1']
    #allocation4 [shape = 's32[1]{0}', space=sflag, size = 0x4, scoped, tag = 'scoped memory for tpu_custom_call.1']
    #allocation5 [shape = 'u8[8192]{0}', space=vmem, size = 0x2000, scoped, tag = 'input window, operand 1, single buffered']
    #allocation6 [shape = 's32[1]{0}', space=sflag, size = 0x4, scoped, tag = 'scoped memory for tpu_custom_call.1']
    #allocation7 [shape = 'u8[1024]{0}', space=vmem, size = 0x400, scoped, tag = 'output window, operand 0, single buffered']
    #allocation8 [shape = 'u8[1024]{0}', space=vmem, size = 0x400, scoped, tag = 'output window, operand 1, single buffered']
    #allocation9 [shape = 's32[1]{0}', space=sflag, size = 0x4, scoped, tag = 'scoped memory for tpu_custom_call.1']
    %9 = vsyncpa [#allocation3], 0
    %10 = vsyncpa [#allocation6], 0
    %11 = vsyncpa [#allocation4], 0
    %12 = vsyncpa [#allocation9], 0
    // Predicated region
    $region2: #{tpu_custom_call.1} parent=1 // pred_check
      _
    $region3: #{tpu_custom_call.1} parent=1 // pred_check_branch
      %14 = sbr.rel (0) target = $region5
    $region4: #{tpu_custom_call.1} parent=1 // pred_region
      %s16 = ssub.s32 512, 512
      %17 = vsyncadd [#allocation3], %s16
      %s18 = sshll.u32 [#allocation2], 4
      %s19 = int_to_ptr.vmem [resolvable:$true] %s18
      %24 = dma.hbm_to_vmem [thread:$0]  %s0, 512, %s19, [#allocation3], 128, 128, 8
    $region5: #{tpu_custom_call.1} parent=1 // pred_fallthru
      _
    // Predicated region
    $region6: #{tpu_custom_call.1} parent=1 // pred_check
      _
    $region7: #{tpu_custom_call.1} parent=1 // pred_check_branch
      %26 = sbr.rel (0) target = $region9
    $region8: #{tpu_custom_call.1} parent=1 // pred_region
      %s28 = ssub.s32 256, 256
      %29 = vsyncadd [#allocation6], %s28
      %s30 = sshll.u32 [#allocation5], 4
      %s31 = int_to_ptr.vmem [resolvable:$true] %s30
      %36 = dma.hbm_to_vmem [thread:$0]  %s1, 256, %s31, [#allocation6], 128, 128, 8
    $region9: #{tpu_custom_call.1} parent=1 // pred_fallthru
      _
    // Predicated region
    $region10: #{tpu_custom_call.1} parent=1 // pred_check
      _
    $region11: #{tpu_custom_call.1} parent=1 // pred_check_branch
      %38 = sbr.rel (0) target = $region13
    $region12: #{tpu_custom_call.1} parent=1 // pred_region
      %39 = dma.done [#allocation3], 512
    $region13: #{tpu_custom_call.1} parent=1 // pred_fallthru
      _
    // Predicated region
    $region14: #{tpu_custom_call.1} parent=1 // pred_check
      _
    $region15: #{tpu_custom_call.1} parent=1 // pred_check_branch
      %41 = sbr.rel (0) target = $region17
    $region16: #{tpu_custom_call.1} parent=1 // pred_region
      %42 = dma.done [#allocation6], 256
    $region17: #{tpu_custom_call.1} parent=1 // pred_fallthru
      _
    %v43 = vld [vmem:[#allocation2] sm:$0xff]
    %v44 = vld [vmem:[#allocation2 + $0x8] sm:$0xff]
    %v45 = vld [vmem:[#allocation2 + $0x10] sm:$0xff]
    %v46 = vld [vmem:[#allocation2 + $0x18] sm:$0xff]
    %v47 = vld [vmem:[#allocation5] sm:$0xff]
    %v48 = vld [vmem:[#allocation5 + $0x8] sm:$0xff]
    %vm49 = vcmask 261120
    %v51 = vsel %vm49, %v47, 0
    %v54 = vsel %vm49, %v43, 0
    %v57 = vsel %vm49, %v44, 0
    %59 = vmatprep.subr.mxu0 0.0
    %60 = vmatpush1.xpose.msra.mxu0 %v54
    %61 = vmatprep.subr.mxu0 0.0
    %62 = vmatpush1.xpose.msra.mxu0 %v57
    %63 = vmatprep.subr.mxu0 0.0
    %64 = vmatpush1.xpose.msra.mxu0 0.0
    %65 = vmatprep.subr.mxu0 0.0
    %66 = vmatpush1.xpose.msra.mxu0 0.0
    %67 = vmatprep.subr.mxu0 0.0
    %68 = vmatpush1.xpose.msra.mxu0 0.0
    %69 = vmatprep.subr.mxu0 0.0
    %70 = vmatpush1.xpose.msra.mxu0 0.0
    %71 = vmatprep.subr.mxu0 0.0
    %72 = vmatpush1.xpose.msra.mxu0 0.0
    %73 = vmatprep.subr.mxu0 0.0
    %74 = vmatpush1.xpose.msra.mxu0 0.0
    %75 = vmatprep.subr.mxu0 0.0
    %76 = vmatpush1.xpose.msra.mxu0 0.0
    %77 = vmatprep.subr.mxu0 0.0
    %78 = vmatpush1.xpose.msra.mxu0 0.0
    %79 = vmatprep.subr.mxu0 0.0
    %80 = vmatpush1.xpose.msra.mxu0 0.0
    %81 = vmatprep.subr.mxu0 0.0
    %82 = vmatpush1.xpose.msra.mxu0 0.0
    %83 = vmatprep.subr.mxu0 0.0
    %84 = vmatpush1.xpose.msra.mxu0 0.0
    %85 = vmatprep.subr.mxu0 0.0
    %86 = vmatpush1.xpose.msra.mxu0 0.0
    %87 = vmatprep.subr.mxu0 0.0
    %88 = vmatpush1.xpose.msra.mxu0 0.0
    %89 = vmatprep.subr.mxu0 0.0
    %90 = vmatpush1.xpose.msra.mxu0 0.0
    %91 = vmatprep.subr.mxu0 0.0
    %92 = vmatpush1.xpose.msra.mxu0 0.0
    %93 = vmatprep.subr.mxu0 0.0
    %94 = vmatpush1.xpose.msra.mxu0 0.0
    %95 = vmatprep.subr.mxu0 0.0
    %96 = vmatpush1.xpose.msra.mxu0 0.0
    %97 = vmatprep.subr.mxu0 0.0
    %98 = vmatpush1.xpose.msra.mxu0 0.0
    %99 = vmatprep.subr.mxu0 0.0
    %100 = vmatpush1.xpose.msra.mxu0 0.0
    %101 = vmatprep.subr.mxu0 0.0
    %102 = vmatpush1.xpose.msra.mxu0 0.0
    %103 = vmatprep.subr.mxu0 0.0
    %104 = vmatpush1.xpose.msra.mxu0 0.0
    %105 = vmatprep.subr.mxu0 0.0
    %106 = vmatpush1.xpose.msra.mxu0 0.0
    %107 = vmatprep.subr.mxu0 0.0
    %108 = vmatpush1.xpose.msra.mxu0 0.0
    %109 = vmatprep.subr.mxu0 0.0
    %110 = vmatpush1.xpose.msra.mxu0 0.0
    %111 = vmatprep.subr.mxu0 0.0
    %112 = vmatpush1.xpose.msra.mxu0 0.0
    %113 = vmatprep.subr.mxu0 0.0
    %114 = vmatpush1.xpose.msra.mxu0 0.0
    %115 = vmatprep.subr.mxu0 0.0
    %116 = vmatpush1.xpose.msra.mxu0 0.0
    %117 = vmatprep.subr.mxu0 0.0
    %118 = vmatpush1.xpose.msra.mxu0 0.0
    %119 = vmatprep.subr.mxu0 0.0
    %120 = vmatpush1.xpose.msra.mxu0 0.0
    %121 = vmatprep.subr.mxu0 0.0
    %122 = vmatpush1.xpose.msra.mxu0 0.0
    %123 = vmatprep.mubr.f32.mxu0 0.0
    %124 = vmatmul.mubr.f32.gmra.mrb[0].mxu0 %v51
    %v125 = vpop.f32.mrb[0].mxu0
    %v126 = vadd.f32 0.0, %v125
    %v127 = vpop.f32.mrb[0].mxu0
    %128 = vdwg.mxu0
    %v130 = vsel %vm49, %v48, 0
    %v133 = vsel %vm49, %v45, 0
    %v136 = vsel %vm49, %v46, 0
    %138 = vmatprep.subr.mxu0 0.0
    %139 = vmatpush1.xpose.msra.mxu0 %v133
    %140 = vmatprep.subr.mxu0 0.0
    %141 = vmatpush1.xpose.msra.mxu0 %v136
    %142 = vmatprep.subr.mxu0 0.0
    %143 = vmatpush1.xpose.msra.mxu0 0.0
    %144 = vmatprep.subr.mxu0 0.0
    %145 = vmatpush1.xpose.msra.mxu0 0.0
    %146 = vmatprep.subr.mxu0 0.0
    %147 = vmatpush1.xpose.msra.mxu0 0.0
    %148 = vmatprep.subr.mxu0 0.0
    %149 = vmatpush1.xpose.msra.mxu0 0.0
    %150 = vmatprep.subr.mxu0 0.0
    %151 = vmatpush1.xpose.msra.mxu0 0.0
    %152 = vmatprep.subr.mxu0 0.0
    %153 = vmatpush1.xpose.msra.mxu0 0.0
    %154 = vmatprep.subr.mxu0 0.0
    %155 = vmatpush1.xpose.msra.mxu0 0.0
    %156 = vmatprep.subr.mxu0 0.0
    %157 = vmatpush1.xpose.msra.mxu0 0.0
    %158 = vmatprep.subr.mxu0 0.0
    %159 = vmatpush1.xpose.msra.mxu0 0.0
    %160 = vmatprep.subr.mxu0 0.0
    %161 = vmatpush1.xpose.msra.mxu0 0.0
    %162 = vmatprep.subr.mxu0 0.0
    %163 = vmatpush1.xpose.msra.mxu0 0.0
    %164 = vmatprep.subr.mxu0 0.0
    %165 = vmatpush1.xpose.msra.mxu0 0.0
    %166 = vmatprep.subr.mxu0 0.0
    %167 = vmatpush1.xpose.msra.mxu0 0.0
    %168 = vmatprep.subr.mxu0 0.0
    %169 = vmatpush1.xpose.msra.mxu0 0.0
    %170 = vmatprep.subr.mxu0 0.0
    %171 = vmatpush1.xpose.msra.mxu0 0.0
    %172 = vmatprep.subr.mxu0 0.0
    %173 = vmatpush1.xpose.msra.mxu0 0.0
    %174 = vmatprep.subr.mxu0 0.0
    %175 = vmatpush1.xpose.msra.mxu0 0.0
    %176 = vmatprep.subr.mxu0 0.0
    %177 = vmatpush1.xpose.msra.mxu0 0.0
    %178 = vmatprep.subr.mxu0 0.0
    %179 = vmatpush1.xpose.msra.mxu0 0.0
    %180 = vmatprep.subr.mxu0 0.0
    %181 = vmatpush1.xpose.msra.mxu0 0.0
    %182 = vmatprep.subr.mxu0 0.0
    %183 = vmatpush1.xpose.msra.mxu0 0.0
    %184 = vmatprep.subr.mxu0 0.0
    %185 = vmatpush1.xpose.msra.mxu0 0.0
    %186 = vmatprep.subr.mxu0 0.0
    %187 = vmatpush1.xpose.msra.mxu0 0.0
    %188 = vmatprep.subr.mxu0 0.0
    %189 = vmatpush1.xpose.msra.mxu0 0.0
    %190 = vmatprep.subr.mxu0 0.0
    %191 = vmatpush1.xpose.msra.mxu0 0.0
    %192 = vmatprep.subr.mxu0 0.0
    %193 = vmatpush1.xpose.msra.mxu0 0.0
    %194 = vmatprep.subr.mxu0 0.0
    %195 = vmatpush1.xpose.msra.mxu0 0.0
    %196 = vmatprep.subr.mxu0 0.0
    %197 = vmatpush1.xpose.msra.mxu0 0.0
    %198 = vmatprep.subr.mxu0 0.0
    %199 = vmatpush1.xpose.msra.mxu0 0.0
    %200 = vmatprep.subr.mxu0 0.0
    %201 = vmatpush1.xpose.msra.mxu0 0.0
    %202 = vmatprep.mubr.f32.mxu0 0.0
    %203 = vmatmul.mubr.f32.gmra.mrb[0].mxu0 %v130
    %v204 = vpop.f32.mrb[0].mxu0
    %v205 = vadd.f32 0.0, %v204
    %v206 = vpop.f32.mrb[0].mxu0
    %207 = vdwg.mxu0
    %v208 = vmul.f32 %v126, 0.17677669
    %v209 = vmul.f32 %v205, 0.17677669
    %vm210 = vcmask 130048
    %v211 = vsel %vm210, %v208, -inf
    %212 = vmax.xlane.f32.xlu0 %v211
    %v213 = vpop.xlane.xlu0 %212
    %v214 = vsel %vm210, %v209, -inf
    %215 = vmax.xlane.f32.xlu0 %v214
    %v216 = vpop.xlane.xlu0 %215
    %v217 = vrot.slane %v213, 4
    %v218 = vmax.f32 %v213, %v217
    %v219 = vrot.slane %v218, 2
    %v220 = vmax.f32 %v218, %v219
    %v221 = vrot.slane %v220, 1
    %v222 = vmax.f32 %v220, %v221
    %v223 = vrot.slane %v216, 4
    %v224 = vmax.f32 %v216, %v223
    %v225 = vrot.slane %v224, 2
    %v226 = vmax.f32 %v224, %v225
    %v227 = vrot.slane %v226, 1
    %v228 = vmax.f32 %v226, %v227
    %v229 = vsub.f32 %v208, %v222
    %v230 = vsub.f32 %v209, %v228
    %v231 = vmul.f32 %v229, 1.442695
    %v232 = vpow.pop %v231
    %v233 = vmul.f32 %v230, 1.442695
    %v234 = vpow.pop %v233
    %v235 = vsel %vm210, %v232, 0.0
    %236 = vadd.xlane.f32.xlu0 %v235
    %v237 = vpop.xlane.xlu0 %236
    %v238 = vsel %vm210, %v234, 0.0
    %239 = vadd.xlane.f32.xlu0 %v238
    %v240 = vpop.xlane.xlu0 %239
    %v241 = vrot.slane %v235, 4
    %v242 = vadd.f32 %v235, %v241
    %v243 = vrot.slane %v242, 2
    %v244 = vadd.f32 %v242, %v243
    %v245 = vrot.slane %v244, 1
    %v246 = vadd.f32 %v244, %v245
    %v247 = vrot.slane %v238, 4
    %v248 = vadd.f32 %v238, %v247
    %v249 = vrot.slane %v248, 2
    %v250 = vadd.f32 %v248, %v249
    %v251 = vrot.slane %v250, 1
    %v252 = vadd.f32 %v250, %v251
    %v253 = vrcp.pop %v246
    %v254 = vrcp.pop %v252
    %v255 = vrcp.pop %v237
    %v256 = vrcp.pop %v240
    %v257 = vmul.f32 %v232, %v253
    %v258 = vmul.f32 %v234, %v254
    %v259 = vsel %vm210, %v257, 0.0
    %260 = vadd.xlane.f32.xlu0 %v259
    %v261 = vpop.xlane.xlu0 %260
    %v262 = vsel %vm210, %v258, 0.0
    %263 = vadd.xlane.f32.xlu0 %v262
    %v264 = vpop.xlane.xlu0 %263
    %v265 = vmul.f32 %v261, 0.0625
    %v266 = vmul.f32 %v264, 0.0625
    %v267 = vmul.f32 %v265, %v255
    %v268 = vmul.f32 %v266, %v256
    %v269 = vmul.f32 %v232, %v267
    %v270 = vmul.f32 %v234, %v268
    %v271 = vsel %vm210, %v269, 0.0
    %v272 = vrot.slane %v271, 4
    %v273 = vadd.f32 %v271, %v272
    %v274 = vrot.slane %v273, 2
    %v275 = vadd.f32 %v273, %v274
    %v276 = vrot.slane %v275, 1
    %v277 = vadd.f32 %v275, %v276
    %v278 = vsel %vm210, %v270, 0.0
    %v279 = vrot.slane %v278, 4
    %v280 = vadd.f32 %v278, %v279
    %v281 = vrot.slane %v280, 2
    %v282 = vadd.f32 %v280, %v281
    %v283 = vrot.slane %v282, 1
    %v284 = vadd.f32 %v282, %v283
    %vm287 = vcmask 1041409
    %v288 = vsel %vm287, %v284, %v277
    %vm290 = vcmask 123904
    %291 = vst.msk [vmem:[#allocation7] sm:$0x3] %vm290, %v288
    %v294 = vlaneseq
    %v295 = vand.u32 %v294, 127
    %v296 = vlaneseq
    %v297 = vshrl.u32 %v296, 7
    %v298 = vsub.s32 %v295, %v297
    %v299 = vrot.slane %v265, %v298
    %v300 = vlaneseq
    %v301 = vshrl.u32 %v300, 7
    %v302 = vsub.s32 %v295, %v301
    %v303 = vrot.slane %v266, %v302
    %v304 = vsel %vm287, %v303, %v299
    %vm306 = vcmask 58368
    %307 = vst.msk [vmem:[#allocation8] sm:$0x3] %vm306, %v304
    // Predicated region
    $region18: #{tpu_custom_call.1} parent=1 // pred_check
      _
    $region19: #{tpu_custom_call.1} parent=1 // pred_check_branch
      %309 = sbr.rel (0) target = $region21
    $region20: #{tpu_custom_call.1} parent=1 // pred_region
      %s311 = ssub.s32 32, 32
      %312 = vsyncadd [#allocation4], %s311
      %s314 = sshll.u32 [#allocation7], 4
      %s315 = int_to_ptr.vmem [resolvable:$true] %s314
      %317 = dma.vmem_to_hbm [thread:$0]  %s315, 32, %s2, [#allocation4]
    $region21: #{tpu_custom_call.1} parent=1 // pred_fallthru
      _
    // Predicated region
    $region22: #{tpu_custom_call.1} parent=1 // pred_check
      _
    $region23: #{tpu_custom_call.1} parent=1 // pred_check_branch
      %319 = sbr.rel (0) target = $region25
    $region24: #{tpu_custom_call.1} parent=1 // pred_region
      %s321 = ssub.s32 32, 32
      %322 = vsyncadd [#allocation9], %s321
      %s324 = sshll.u32 [#allocation8], 4
      %s325 = int_to_ptr.vmem [resolvable:$true] %s324
      %327 = dma.vmem_to_hbm [thread:$0]  %s325, 32, %s3, [#allocation9]
    $region25: #{tpu_custom_call.1} parent=1 // pred_fallthru
      _
    // Predicated region
    $region26: #{tpu_custom_call.1} parent=1 // pred_check
      _
    $region27: #{tpu_custom_call.1} parent=1 // pred_check_branch
      %329 = sbr.rel (0) target = $region29
    $region28: #{tpu_custom_call.1} parent=1 // pred_region
      %330 = dma.done [#allocation4], 32
    $region29: #{tpu_custom_call.1} parent=1 // pred_fallthru
      _
    // Predicated region
    $region30: #{tpu_custom_call.1} parent=1 // pred_check
      _
    $region31: #{tpu_custom_call.1} parent=1 // pred_check_branch
      %332 = sbr.rel (0) target = $region33
    $region32: #{tpu_custom_call.1} parent=1 // pred_region
      %333 = dma.done [#allocation9], 32
    $region33: #{tpu_custom_call.1} parent=1 // pred_fallthru
      _
    %334 = vsyncpa [#allocation3], 1
    %335 = vsyncpa [#allocation6], 1
    %336 = vsyncpa [#allocation4], 1
    %337 = vsyncpa [#allocation9], 1

</llo_original>
